<compile_context>
chip_gen: v7x
topology: tpu7x:2x2x1
jax: 0.10.0
libtpu: 0.0.40
codegen_flags: <defaults>
</compile_context>

<pallas_src>
import functools

import jax
import jax.numpy as jnp
import numpy as np
from jax.experimental import pallas as pl
from jax.experimental.pallas import tpu as pltpu


def _linear_comb_vc_kernel(
    x_ref, pooln_ref, m_ref, out_ref, reg_ref, *, tile_cols, chunk, hw_valid
):
    """One (batch, hw-tile) grid step.

    x_ref:     (1, c, tile_cols)  f32 input block
    pooln_ref: (P, c)             f32, rows pre-normalized (resident)
    m_ref:     (c, c)             f32, M = pool.T @ pool_n (resident)
    out_ref:   (1, c, tile_cols)  f32 reconstruction block
    reg_ref:   (1, 1, chunk)      f32 lane-wise partial sums of |cos|
    """
    j = pl.program_id(1)

    # Hoisted VMEM->vreg loads of the tiny resident operands.
    pool_n = pooln_ref[...]   # (P, c)
    m = m_ref[...]            # (c, c)

    num_chunks = tile_cols // chunk  # static python int

    def chunk_body(ci, reg_acc):
        off = pl.multiple_of(ci * chunk, chunk)
        xc = x_ref[0, :, pl.ds(off, chunk)]                              # (c, chunk)

        # 1 / ||x_col||  via rsqrt (EUP slot).  Mask padded lane columns to 0
        # so they contribute nothing to recon or reg (and never produce NaN).
        inv = jax.lax.rsqrt(jnp.sum(xc * xc, axis=0, keepdims=True))     # (1, chunk)
        col = (j * tile_cols + off
               + jax.lax.broadcasted_iota(jnp.int32, (1, chunk), 1))
        inv = jnp.where(col < hw_valid, inv, 0.0)

        # cos numerator for the regularizer only: (P, chunk) on the MXU.
        dot = jnp.dot(pool_n, xc, preferred_element_type=jnp.float32)

        # recon = pool.T @ cos  ==  (pool.T @ pool_n) @ x * inv_norm  =  M @ x * inv
        out_ref[0, :, pl.ds(off, chunk)] = (
            jnp.dot(m, xc, preferred_element_type=jnp.float32) * inv
        ).astype(out_ref.dtype)

        # Per-lane partial of sum_P |cos| = (sum_P |dot|) * inv.
        return reg_acc + jnp.sum(jnp.abs(dot), axis=0, keepdims=True) * inv

    reg_vec = jax.lax.fori_loop(
        0, num_chunks, chunk_body,
        jnp.zeros((1, chunk), jnp.float32), unroll=True)

    # Lane-dense (chunk is a multiple of 128) unmasked store; the global
    # reduction over (n, num_tiles, chunk) is a tiny wrapper-side sum.
    reg_ref[...] = reg_vec.reshape(1, 1, chunk)


def _choose_tiles(hw, c, vmem_budget_bytes=6 * 1024 * 1024):
    """Pick (outer lane tile T, inner compute chunk).

    Only the double-buffered (c, T) x/recon blocks scale with T in VMEM
    (16*c bytes per lane column); the (P, chunk) dot/|dot| temporaries are
    bounded by the fixed inner chunk, so vreg pressure stays low even for
    large T.  The 6 MiB budget stays inside the scoped-VMEM defaults of every
    generation (v5e 16 MiB, v6e 32 MiB of 128 MiB, v7x 32 MiB of 64 MiB).
    """
    hw_128 = ((hw + 127) // 128) * 128
    chunk = min(512, hw_128)                       # keeps (P, chunk) <= ~16 vregs
    bytes_per_col = 4 * (2 * c + 2 * c)            # 2x-buffered x + recon blocks
    t = vmem_budget_bytes // max(bytes_per_col, 1)
    t = max(chunk, (t // chunk) * chunk)
    t = min(t, 8192)                               # amortize ~0.35us per grid step
    hw_chunked = ((hw + chunk - 1) // chunk) * chunk
    return min(t, hw_chunked), chunk


def linear_comb_vc_forward(x_nchw, visual_concept_pool, *, lambda_l1_reg_dot=1.0):
    """Mode 1.0 forward pass.

    x_nchw: (n, c, h, w) float32
    visual_concept_pool: (P, c) float32
    returns: (reconstruct (n, c, h, w), regularization scalar)
    """
    n, c, h, w = x_nchw.shape
    hw = h * w
    P, cd = visual_concept_pool.shape
    assert cd == c, "visual_concept_dim must equal channel count"

    # ---- grid-invariant pool work, hoisted out of the kernel ----
    pool = visual_concept_pool.astype(jnp.float32)
    pool_row_norm = jnp.sqrt(jnp.sum(pool * pool, axis=1, keepdims=True))   # (P, 1)
    pool_n = pool / pool_row_norm                                           # (P, c)
    # Folded second matmul:  recon = pool.T @ cos = (pool.T @ pool_n) @ x * inv_norm.
    m = jnp.dot(pool.T, pool_n, precision=jax.lax.Precision.HIGHEST)        # (c, c)

    # Native layout, no transpose: (n, c, h, w) -> (n, c, hw) is a free reshape.
    x3 = x_nchw.reshape(n, c, hw).astype(jnp.float32)

    tile, chunk = _choose_tiles(hw, c)
    num_j = pl.cdiv(hw, tile)
    hw_pad = num_j * tile
    if hw_pad != hw:
        x3 = jnp.pad(x3, ((0, 0), (0, 0), (0, hw_pad - hw)))

    kernel = functools.partial(
        _linear_comb_vc_kernel, tile_cols=tile, chunk=chunk, hw_valid=hw)

    recon3, reg_parts = pl.pallas_call(
        kernel,
        out_shape=(
            jax.ShapeDtypeStruct((n, c, hw_pad), jnp.float32),
            jax.ShapeDtypeStruct((n, num_j, chunk), jnp.float32),
        ),
        grid_spec=pltpu.PrefetchScalarGridSpec(
            num_scalar_prefetch=0,
            grid=(n, num_j),
            in_specs=[
                pl.BlockSpec((1, c, tile), lambda b, j: (b, 0, j)),  # x block
                pl.BlockSpec((P, c), lambda b, j: (0, 0)),           # pool_n (resident)
                pl.BlockSpec((c, c), lambda b, j: (0, 0)),           # M (resident)
            ],
            out_specs=[
                pl.BlockSpec((1, c, tile), lambda b, j: (b, 0, j)),  # recon block
                pl.BlockSpec((1, 1, chunk), lambda b, j: (b, j, 0)),  # reg partials
            ],
        ),
        compiler_params=pltpu.CompilerParams(
            # Both axes independent -> megacore sharding on v7x.
            dimension_semantics=("parallel", "parallel"),
            vmem_limit_bytes=32 * 1024 * 1024,  # usage ~<=6 MiB; safe on v5e/v6e/v7x
        ),
    )(x3, pool_n, m)

    recon = recon3 if hw_pad == hw else recon3[:, :, :hw]
    recon = recon.reshape(n, c, h, w)

    reg = (jnp.sum(reg_parts) / jnp.float32(n * P * hw)
           * jnp.float32(lambda_l1_reg_dot))
    return recon, reg


def _reference_forward(x_nchw, pool, lambda_l1=1.0):
    n, c, h, w = x_nchw.shape
    hp = jax.lax.Precision.HIGHEST
    xr = x_nchw.reshape(n, c, h * w)
    dot = jnp.einsum("pc,ncs->nps", pool, xr, precision=hp)
    pn = jnp.sqrt(jnp.sum(pool ** 2, axis=1))                 # (P,)
    xn = jnp.sqrt(jnp.sum(xr ** 2, axis=1, keepdims=True))    # (n, 1, HW)
    cos = dot / (pn[None, :, None] * xn)
    recon = jnp.einsum("pc,nps->ncs", pool, cos, precision=hp).reshape(n, c, h, w)
    reg = jnp.mean(jnp.abs(cos)) * lambda_l1
    return recon, reg


if __name__ == "__main__":
    # Module config (synthetic, deterministic init).
    topk = 0.25
    visual_concept_pool_size = 32   # P
    visual_concept_dim = 4          # must equal channel count c
    mode = 1.0
    lambda_l1_reg_dot = 1.0

    key = jax.random.PRNGKey(0)
    kx, kp = jax.random.split(key)

    n, c, h, w = 2, visual_concept_dim, 16, 16
    x = jax.random.normal(kx, (n, c, h, w), dtype=jnp.float32)
    # torch.rand -> uniform [0, 1)
    visual_concept_pool = jax.random.uniform(
        kp, (visual_concept_pool_size, visual_concept_dim), dtype=jnp.float32
    )

    recon, reg = linear_comb_vc_forward(
        x, visual_concept_pool, lambda_l1_reg_dot=lambda_l1_reg_dot
    )
    recon = jax.block_until_ready(recon)
    reg = jax.block_until_ready(reg)

    # Sanity check vs pure-JAX reference.
    recon_exp, reg_exp = _reference_forward(x, visual_concept_pool, lambda_l1_reg_dot)
    np.testing.assert_allclose(
        np.asarray(recon), np.asarray(recon_exp), rtol=1e-5, atol=1e-5
    )
    np.testing.assert_allclose(
        np.asarray(reg), np.asarray(reg_exp), rtol=1e-5, atol=1e-6
    )

    print("KERNEL_OK")
</pallas_src>

<mosaic_0001>
module attributes {stable_mosaic.version = 11 : i64} {
  func.func @_linear_comb_vc_kernel(%arg0: i32, %arg1: i32, %arg2: memref<1x4x256xf32, #tpu.memory_space<vmem>>, %arg3: memref<32x4xf32, #tpu.memory_space<vmem>>, %arg4: memref<4x4xf32, #tpu.memory_space<vmem>>, %arg5: memref<1x4x256xf32, #tpu.memory_space<vmem>>, %arg6: memref<1x1x256xf32, #tpu.memory_space<vmem>>) attributes {dimension_semantics = [#tpu.dimension_semantics<parallel>, #tpu.dimension_semantics<parallel>], iteration_bounds = array<i64: 2, 1>, scalar_prefetch = 0 : i64, scratch_operands = 0 : i64, tpu.core_type = #tpu.core_type<tc>, window_params = [{transform_indices = @transform_0, window_bounds = array<i64: 1, 4, 256>}, {pipeline_mode = #tpu.pipeline_mode<synchronous>, transform_indices = @transform_1, window_bounds = array<i64: 32, 4>}, {pipeline_mode = #tpu.pipeline_mode<synchronous>, transform_indices = @transform_2, window_bounds = array<i64: 4, 4>}, {transform_indices = @transform_3, window_bounds = array<i64: 1, 4, 256>}, {transform_indices = @transform_4, window_bounds = array<i64: 1, 1, 256>}]} {
    %c0 = arith.constant 0 : index
    %c0_0 = arith.constant 0 : index
    %0 = vector.load %arg3[%c0, %c0_0] : memref<32x4xf32, #tpu.memory_space<vmem>>, vector<32x4xf32>
    %c0_1 = arith.constant 0 : index
    %c0_2 = arith.constant 0 : index
    %1 = vector.load %arg4[%c0_1, %c0_2] : memref<4x4xf32, #tpu.memory_space<vmem>>, vector<4x4xf32>
    %cst = arith.constant 0.000000e+00 : f32
    %2 = vector.broadcast %cst : f32 to vector<1x256xf32>
    %c0_i32 = arith.constant 0 : i32
    %c256_i32 = arith.constant 256 : i32
    %3 = arith.muli %c0_i32, %c256_i32 : i32
    %4 = tpu.assume_multiple %3, 256 : i32
    %c0_3 = arith.constant 0 : index
    %c0_4 = arith.constant 0 : index
    %5 = arith.index_cast %4 : i32 to index
    %6 = vector.load %arg2[%c0_3, %c0_4, %5] : memref<1x4x256xf32, #tpu.memory_space<vmem>>, vector<1x4x256xf32>
    %7 = vector.shape_cast %6 : vector<1x4x256xf32> to vector<4x256xf32>
    %8 = arith.mulf %7, %7 : vector<4x256xf32>
    %cst_5 = arith.constant dense<0.000000e+00> : vector<256xf32>
    %9 = vector.multi_reduction <add>, %8, %cst_5 [0] : vector<4x256xf32> to vector<256xf32>
    %10 = vector.shape_cast %9 : vector<256xf32> to vector<1x256xf32>
    %11 = math.rsqrt %10 : vector<1x256xf32>
    %c256_i32_6 = arith.constant 256 : i32
    %12 = arith.muli %arg1, %c256_i32_6 : i32
    %13 = arith.addi %12, %4 : i32
    %14 = tpu.iota {dimensions = array<i32: 1>} : vector<1x256xi32>
    %15 = vector.broadcast %13 : i32 to vector<1x256xi32>
    %16 = arith.addi %15, %14 : vector<1x256xi32>
    %c256_i32_7 = arith.constant 256 : i32
    %17 = vector.broadcast %c256_i32_7 : i32 to vector<1x256xi32>
    %18 = arith.cmpi slt, %16, %17 : vector<1x256xi32>
    %cst_8 = arith.constant 0.000000e+00 : f32
    %19 = vector.broadcast %cst_8 : f32 to vector<1x256xf32>
    %20 = arith.select %18, %11, %19 : vector<1x256xi1>, vector<1x256xf32>
    %cst_9 = arith.constant dense<0.000000e+00> : vector<32x256xf32>
    %21 = tpu.matmul %0, %7, %cst_9 {dimension_numbers = #tpu.dot_dimension_numbers<[1], [0], [0], [1], [0, 0, 1, 1], [], []>} : vector<32x4xf32>, vector<4x256xf32>, vector<32x256xf32> -> vector<32x256xf32>
    %cst_10 = arith.constant dense<0.000000e+00> : vector<4x256xf32>
    %22 = tpu.matmul %1, %7, %cst_10 {dimension_numbers = #tpu.dot_dimension_numbers<[1], [0], [0], [1], [0, 0, 1, 1], [], []>} : vector<4x4xf32>, vector<4x256xf32>, vector<4x256xf32> -> vector<4x256xf32>
    %23 = vector.broadcast %20 : vector<1x256xf32> to vector<4x256xf32>
    %24 = arith.mulf %22, %23 : vector<4x256xf32>
    %c0_11 = arith.constant 0 : index
    %c0_12 = arith.constant 0 : index
    %25 = arith.index_cast %4 : i32 to index
    %26 = vector.load %arg5[%c0_11, %c0_12, %25] : memref<1x4x256xf32, #tpu.memory_space<vmem>>, vector<1x4x256xf32>
    %27 = vector.shape_cast %26 : vector<1x4x256xf32> to vector<4x256xf32>
    %28 = vector.shape_cast %24 : vector<4x256xf32> to vector<1x4x256xf32>
    tpu.vector_store %arg5[%c0_11, %c0_12, %25], %28 {strides = array<i32>} : memref<1x4x256xf32, #tpu.memory_space<vmem>>, vector<1x4x256xf32>,
    %29 = math.absf %21 : vector<32x256xf32>
    %cst_13 = arith.constant dense<0.000000e+00> : vector<256xf32>
    %30 = vector.multi_reduction <add>, %29, %cst_13 [0] : vector<32x256xf32> to vector<256xf32>
    %31 = vector.shape_cast %30 : vector<256xf32> to vector<1x256xf32>
    %32 = arith.mulf %31, %20 : vector<1x256xf32>
    %33 = arith.addf %2, %32 : vector<1x256xf32>
    %c1_i32 = arith.constant 1 : i32
    %34 = vector.shape_cast %33 : vector<1x256xf32> to vector<1x1x256xf32>
    %c0_14 = arith.constant 0 : index
    %c0_15 = arith.constant 0 : index
    %c0_16 = arith.constant 0 : index
    %35 = vector.load %arg6[%c0_14, %c0_15, %c0_16] : memref<1x1x256xf32, #tpu.memory_space<vmem>>, vector<1x1x256xf32>
    tpu.vector_store %arg6[%c0_14, %c0_15, %c0_16], %34 {strides = array<i32>} : memref<1x1x256xf32, #tpu.memory_space<vmem>>, vector<1x1x256xf32>,
    return
  }
  func.func @transform_0(%arg0: i32, %arg1: i32) -> (i32, i32, i32) {
    %c0_i32 = arith.constant 0 : i32
    %c0_i32_0 = arith.constant 0 : i32
    return %arg0, %c0_i32, %arg1 : i32, i32, i32
  }
  func.func @transform_1(%arg0: i32, %arg1: i32) -> (i32, i32) {
    %c0_i32 = arith.constant 0 : i32
    %c0_i32_0 = arith.constant 0 : i32
    %c0_i32_1 = arith.constant 0 : i32
    return %c0_i32, %c0_i32_0 : i32, i32
  }
  func.func @transform_2(%arg0: i32, %arg1: i32) -> (i32, i32) {
    %c0_i32 = arith.constant 0 : i32
    %c0_i32_0 = arith.constant 0 : i32
    %c0_i32_1 = arith.constant 0 : i32
    return %c0_i32, %c0_i32_0 : i32, i32
  }
  func.func @transform_3(%arg0: i32, %arg1: i32) -> (i32, i32, i32) {
    %c0_i32 = arith.constant 0 : i32
    %c0_i32_0 = arith.constant 0 : i32
    return %arg0, %c0_i32, %arg1 : i32, i32, i32
  }
  func.func @transform_4(%arg0: i32, %arg1: i32) -> (i32, i32, i32) {
    %c0_i32 = arith.constant 0 : i32
    %c0_i32_0 = arith.constant 0 : i32
    return %arg0, %arg1, %c0_i32 : i32, i32, i32
  }
}

</mosaic_0001>

<llo_original>
// kernel: tpu_custom_call.1
$region0: #{tpu_custom_call.1}
  #allocation0 [shape = 'u32[]', space=smem, size = 0x4, offset = 0x4, fixed_abs, tag = 'smem constant byte address 0x4 - core index']
  #allocation1 [shape = 'u32[144,128]{1,0:T(1,128)}', space=vmem, size = 0x12000, scoped, tag = 'internal scratch']
  %s0 = inlined_call_operand.vmem [shape: f32[2,4,256], index: 0, kind: input, shape index: {}]
  %s1 = inlined_call_operand.vmem [shape: f32[32,4], index: 1, kind: input, shape index: {}]
  %s2 = inlined_call_operand.vmem [shape: f32[4,4], index: 2, kind: input, shape index: {}]
  %s3 = inlined_call_operand.hbm [shape: f32[2,4,256], index: 3, kind: output, shape index: {0}]
  %s4 = inlined_call_operand.hbm [shape: f32[2,1,256], index: 4, kind: output, shape index: {1}]
  %5 = xla_tuple %s3, %s4
  %s6 = sld [smem:[#allocation0]]
  $region53: #{tpu_custom_call.1} parent=0
    _
  %s8 = ssub.s32 1, %s6
  %s9 = scalar_select 0, %s8, %s6
  $region1: #{tpu_custom_call.1} parent=0
    #allocation2 [shape = 'u8[8192]{0}', space=vmem, size = 0x2000, scoped, tag = 'output window, operand 0']
    #allocation3 [shape = 's32[2]{0}', space=sflag, size = 0x8, scoped, tag = 'scoped memory for tpu_custom_call.1']
    #allocation4 [shape = 'u8[2048]{0}', space=vmem, size = 0x800, scoped, tag = 'output window, operand 1']
    #allocation5 [shape = 's32[2]{0}', space=sflag, size = 0x8, scoped, tag = 'scoped memory for tpu_custom_call.1']
    %10 = vsyncpa [#allocation3], 0
    %s11 = scalar_lea.sflag [#allocation3], 1
    %12 = vsyncpa %s11, 0
    %13 = vsyncpa [#allocation5], 0
    %s14 = scalar_lea.sflag [#allocation5], 1
    %15 = vsyncpa %s14, 0
    loop: start=0, step=1, limit=4
    $region2: #{tpu_custom_call.1} parent=1 // loop_pre_header
      _
    $region3: #{tpu_custom_call.1} parent=1 // loop_header
      %s17 = sphi 0, %s21
      %p18 = scmp.ge.s32.totalorder %s17, 4
      %s24 = sphi 0, %s36
      %s25 = sphi 0, %s32
      %s26 = sphi 0, %s24
      %s27 = sphi 0, %s25
      %s28 = sphi 0, %s26
      %s29 = sphi 0, %s27
      %s41 = sphi 0, %s43
      %s44 = sphi 0, %s41
      %s45 = sphi 0, %s44
      %s61 = sphi 0, %s45
      %s65 = sphi 0, %s65
      %s67 = sphi 0, %s65
      %s68 = sphi 0, %s67
      %s82 = sphi 0, %s68
      %s86 = sphi 0, %s86
      %s88 = sphi 0, %s86
      %s89 = sphi 0, %s88
      %s103 = sphi 0, %s89
      %s111 = sphi 0, %s113
      %s114 = sphi 0, %s111
      %s115 = sphi 0, %s114
      %s131 = sphi 0, %s115
      %s139 = sphi 0, %s141
      %s142 = sphi 0, %s139
      %s143 = sphi 0, %s142
      %s159 = sphi 0, %s143
    $region4: #{tpu_custom_call.1} parent=1 // loop_header_branch
      %20 = sbr.rel (%p18) target = $region8
    $region5: #{tpu_custom_call.1} parent=1 // loop_body
      %s22 = ssub.s32 %s17, 1
      %s23 = ssub.s32 %s17, 2
      %s30 = sadd.s32 1, %s25
      %p31 = scmp.ge.s32.totalorder %s30, 1
      %s32 = scalar_select %p31, 0, %s30
      %s33 = sadd.s32 1, %s24
      %s34 = scalar_select %p31, %s33, %s24
      %p35 = scmp.ge.s32.totalorder %s34, 2
      %s36 = scalar_select %p35, 0, %s34
      %s37 = ssub.s32 %s24, %s36
      %s38 = ssub.s32 %s25, %s32
      %s39 = sor.u32 %s37, %s38
      %p40 = scmp.eq.s32.totalorder %s39, 0
      %s42 = sadd.s32 %s41, 1
      %s43 = scalar_select %p40, %s41, %s42
      %p46 = pneg %p40
      %p47 = scmp.eq.s32.totalorder %s17, 1
      %p48 = por %p46, %p47
      %p49 = scmp.ne.s32.totalorder %s41, %s44
      %p50 = scmp.eq.s32.totalorder %s17, 0
      %p51 = por %p49, %p50
      %p52 = scmp.ne.s32.totalorder %s41, %s44
      %p53 = scmp.eq.s32.totalorder %s22, 1
      %p54 = por %p52, %p53
      %p55 = scmp.ne.s32.totalorder %s44, %s45
      %p56 = scmp.eq.s32.totalorder %s22, 0
      %p57 = por %p55, %p56
      %p58 = scmp.ne.s32.totalorder %s44, %s45
      %p59 = scmp.eq.s32.totalorder %s23, 1
      %p60 = por %p58, %p59
      %p62 = scmp.ne.s32.totalorder %s45, %s61
      %p63 = scmp.eq.s32.totalorder %s23, 0
      %p64 = por %p62, %p63
      %s66 = sadd.s32 %s65, 1
      %p69 = scmp.eq.s32.totalorder %s17, 1
      %p70 = scmp.ne.s32.totalorder %s65, %s67
      %p71 = scmp.eq.s32.totalorder %s17, 0
      %p72 = por %p70, %p71
      %p73 = scmp.ne.s32.totalorder %s65, %s67
      %p74 = scmp.eq.s32.totalorder %s22, 1
      %p75 = por %p73, %p74
      %p76 = scmp.ne.s32.totalorder %s67, %s68
      %p77 = scmp.eq.s32.totalorder %s22, 0
      %p78 = por %p76, %p77
      %p79 = scmp.ne.s32.totalorder %s67, %s68
      %p80 = scmp.eq.s32.totalorder %s23, 1
      %p81 = por %p79, %p80
      %p83 = scmp.ne.s32.totalorder %s68, %s82
      %p84 = scmp.eq.s32.totalorder %s23, 0
      %p85 = por %p83, %p84
      %s87 = sadd.s32 %s86, 1
      %p90 = scmp.eq.s32.totalorder %s17, 1
      %p91 = scmp.ne.s32.totalorder %s86, %s88
      %p92 = scmp.eq.s32.totalorder %s17, 0
      %p93 = por %p91, %p92
      %p94 = scmp.ne.s32.totalorder %s86, %s88
      %p95 = scmp.eq.s32.totalorder %s22, 1
      %p96 = por %p94, %p95
      %p97 = scmp.ne.s32.totalorder %s88, %s89
      %p98 = scmp.eq.s32.totalorder %s22, 0
      %p99 = por %p97, %p98
      %p100 = scmp.ne.s32.totalorder %s88, %s89
      %p101 = scmp.eq.s32.totalorder %s23, 1
      %p102 = por %p100, %p101
      %p104 = scmp.ne.s32.totalorder %s89, %s103
      %p105 = scmp.eq.s32.totalorder %s23, 0
      %p106 = por %p104, %p105
      %s107 = ssub.s32 %s24, %s36
      %s108 = ssub.s32 %s25, %s32
      %s109 = sor.u32 %s107, %s108
      %p110 = scmp.eq.s32.totalorder %s109, 0
      %s112 = sadd.s32 %s111, 1
      %s113 = scalar_select %p110, %s111, %s112
      %p116 = pneg %p110
      %p117 = scmp.eq.s32.totalorder %s17, 1
      %p118 = por %p116, %p117
      %p119 = scmp.ne.s32.totalorder %s111, %s114
      %p120 = scmp.eq.s32.totalorder %s17, 0
      %p121 = por %p119, %p120
      %p122 = scmp.ne.s32.totalorder %s111, %s114
      %p123 = scmp.eq.s32.totalorder %s22, 1
      %p124 = por %p122, %p123
      %p125 = scmp.ne.s32.totalorder %s114, %s115
      %p126 = scmp.eq.s32.totalorder %s22, 0
      %p127 = por %p125, %p126
      %p128 = scmp.ne.s32.totalorder %s114, %s115
      %p129 = scmp.eq.s32.totalorder %s23, 1
      %p130 = por %p128, %p129
      %p132 = scmp.ne.s32.totalorder %s115, %s131
      %p133 = scmp.eq.s32.totalorder %s23, 0
      %p134 = por %p132, %p133
      %s135 = ssub.s32 %s24, %s36
      %s136 = ssub.s32 %s25, %s32
      %s137 = sor.u32 %s135, %s136
      %p138 = scmp.eq.s32.totalorder %s137, 0
      %s140 = sadd.s32 %s139, 1
      %s141 = scalar_select %p138, %s139, %s140
      %p144 = pneg %p138
      %p145 = scmp.eq.s32.totalorder %s17, 1
      %p146 = por %p144, %p145
      %p147 = scmp.ne.s32.totalorder %s139, %s142
      %p148 = scmp.eq.s32.totalorder %s17, 0
      %p149 = por %p147, %p148
      %p150 = scmp.ne.s32.totalorder %s139, %s142
      %p151 = scmp.eq.s32.totalorder %s22, 1
      %p152 = por %p150, %p151
      %p153 = scmp.ne.s32.totalorder %s142, %s143
      %p154 = scmp.eq.s32.totalorder %s22, 0
      %p155 = por %p153, %p154
      %p156 = scmp.ne.s32.totalorder %s142, %s143
      %p157 = scmp.eq.s32.totalorder %s23, 1
      %p158 = por %p156, %p157
      %p160 = scmp.ne.s32.totalorder %s143, %s159
      %p161 = scmp.eq.s32.totalorder %s23, 0
      %p162 = por %p160, %p161
      %p163 = scmp.le.s32.totalorder 1, %s17
      %p164 = scmp.lt.s32.totalorder %s17, 3
      %p165 = pnand %p163, %p164
      %p166 = pneg %p165
      // Predicated region
      $region9: #{tpu_custom_call.1} parent=5 // pred_check
        _
      $region10: #{tpu_custom_call.1} parent=5 // pred_check_branch
        %168 = sbr.rel (%p165) target = $region12
      $region11: #{tpu_custom_call.1} parent=5 // pred_region
        %s169 = ssub.s32 %s17, 1
        // Predicated region
        $region13: #{tpu_custom_call.1} parent=11 // pred_check
          %p170 = pneg %p78
        $region14: #{tpu_custom_call.1} parent=11 // pred_check_branch
          %172 = sbr.rel (%p170) target = $region16
        $region15: #{tpu_custom_call.1} parent=11 // pred_region
          _
        $region16: #{tpu_custom_call.1} parent=11 // pred_fallthru
          _
        // Predicated region
        $region17: #{tpu_custom_call.1} parent=11 // pred_check
          %p173 = pneg %p99
        $region18: #{tpu_custom_call.1} parent=11 // pred_check_branch
          %175 = sbr.rel (%p173) target = $region20
        $region19: #{tpu_custom_call.1} parent=11 // pred_region
          _
        $region20: #{tpu_custom_call.1} parent=11 // pred_fallthru
          _
      $region12: #{tpu_custom_call.1} parent=5 // pred_fallthru
        _
      %p176 = scmp.lt.s32.totalorder %s17, 2
      // Predicated region
      $region21: #{tpu_custom_call.1} parent=5 // pred_check
        %p177 = pneg %p176
      $region22: #{tpu_custom_call.1} parent=5 // pred_check_branch
        %179 = sbr.rel (%p177) target = $region24
      $region23: #{tpu_custom_call.1} parent=5 // pred_region
        // Predicated region
        $region25: #{tpu_custom_call.1} parent=23 // pred_check
          %p180 = pneg %p51
        $region26: #{tpu_custom_call.1} parent=23 // pred_check_branch
          %182 = sbr.rel (%p180) target = $region28
        $region27: #{tpu_custom_call.1} parent=23 // pred_region
          %s183 = smul.u32 2, %s25
          %p184 = scmp.lt.s32.totalorder %s24, 1
          %s185 = scalar_select %p184, %s24, 1
          %p186 = scmp.lt.s32.totalorder %s183, 1
          %s187 = scalar_select %p186, %s183, 1
          %s188 = smul.addr %s185, 2
          %s189 = sadd.s32 %s187, %s188
          %s190 = smul.addr %s189, 4
          %s191 = scalar_lea.vmem %s0, %s190
          %s192 = smul.u32 2, %s25
        $region28: #{tpu_custom_call.1} parent=23 // pred_fallthru
          _
      $region24: #{tpu_custom_call.1} parent=5 // pred_fallthru
        _
      %p193 = scmp.le.s32.totalorder 1, %s17
      %p194 = scmp.lt.s32.totalorder %s17, 3
      %p195 = pnand %p193, %p194
      %p196 = pneg %p195
      // Predicated region
      $region29: #{tpu_custom_call.1} parent=5 // pred_check
        _
      $region30: #{tpu_custom_call.1} parent=5 // pred_check_branch
        %198 = sbr.rel (%p195) target = $region32
      $region31: #{tpu_custom_call.1} parent=5 // pred_region
        %s199 = ssub.s32 %s17, 1
        %s200 = smul.u32 2, %s27
        %p201 = scmp.lt.s32.totalorder %s26, 1
        %s202 = scalar_select %p201, %s26, 1
        %p203 = scmp.lt.s32.totalorder %s200, 1
        %s204 = scalar_select %p203, %s200, 1
        %s205 = smul.addr %s202, 2
        %s206 = sadd.s32 %s204, %s205
        %s207 = smul.addr %s206, 4
        %s208 = scalar_lea.vmem %s0, %s207
        %p209 = pneg %p57
        %p210 = pneg %p54
        %p211 = pneg %p78
        %p212 = pneg %p75
        %p213 = pneg %p99
        %p214 = pneg %p96
        %p215 = pneg %p127
        %p216 = pneg %p124
        %s217 = sand.u32 %s114, 1
        %s218 = scalar_lea.sflag [#allocation3], %s217
        %s219 = sand.u32 %s114, 1
        %s220 = smul.addr %s219, 8
        %s221 = scalar_lea.vmem [#allocation2], %s220
        %p222 = pneg %p155
        %p223 = pneg %p152
        %s224 = sand.u32 %s142, 1
        %s225 = scalar_lea.sflag [#allocation5], %s224
        %s226 = sand.u32 %s142, 1
        %s227 = smul.addr %s226, 2
        %s228 = scalar_lea.vmem [#allocation4], %s227
        %s229 = smul.u32 2, %s27
        %p230 = scmp.lt.s32.totalorder %s26, 1
        %s231 = scalar_select %p230, %s26, 1
        %p232 = scmp.lt.s32.totalorder %s229, 1
        %s233 = scalar_select %p232, %s229, 1
        %s234 = smul.addr %s231, 2
        %s235 = sadd.s32 %s233, %s234
        %s236 = smul.addr %s235, 4
        %s237 = scalar_lea.vmem %s0, %s236
        %s238 = smul.u32 2, %s27
        %s239 = smul.u32 2, %s27
        %v240 = vld [vmem:[%s1] sm:$0xff]
        %v241 = vld [vmem:[%s1 + $0x8] sm:$0xff]
        %v242 = vld [vmem:[%s1 + $0x10] sm:$0xff]
        %v243 = vld [vmem:[%s1 + $0x18] sm:$0xff]
        %v244 = vld [vmem:[%s2] sm:$0xf]
        %v245 = vld [vmem:[%s237] sm:$0xff]
        %v246 = vmul.f32 %v245, %v245
        %v248 = vcombine.high %v246, %v246
        %vm250 = vcmask 1043456
        %v251 = vsel %vm250, %v246, 0.0
        %v252 = vrot.slane %v251, 4
        %v253 = vadd.f32 %v251, %v252
        %v254 = vrot.slane %v253, 2
        %v255 = vadd.f32 %v253, %v254
        %v256 = vrot.slane %v255, 1
        %v257 = vadd.f32 %v255, %v256
        %v258 = vsel %vm250, %v248, 0.0
        %v259 = vrot.slane %v258, 4
        %v260 = vadd.f32 %v258, %v259
        %v261 = vrot.slane %v260, 2
        %v262 = vadd.f32 %v260, %v261
        %v263 = vrot.slane %v262, 1
        %v264 = vadd.f32 %v262, %v263
        %v265 = vrsqrt.pop %v257
        %v266 = vrsqrt.pop %v264
        %s267 = smul.u32 %s27, 256
        %s268 = sadd.s32 %s267, 0
        %v269 = vlaneseq
        %v270 = vand.u32 %v269, 127
        %v271 = vadd.s32 %v270, 128
        %v272 = vstv %s268
        %v273 = vadd.s32 %v272, %v270
        %v274 = vadd.s32 %v272, %v271
        %vm275 = vcmp.lt.s32.totalorder %v273, 256
        %vm276 = vcmp.lt.s32.totalorder %v274, 256
        %v277 = vsel %vm275, %v265, 0.0
        %v278 = vsel %vm276, %v266, 0.0
        %v280 = vcombine.high %v245, %v245
        %vm281 = vcmask 31744
        %v283 = vsel %vm281, %v240, 0
        %v286 = vsel %vm281, %v241, 0
        %v289 = vsel %vm281, %v242, 0
        %v292 = vsel %vm281, %v243, 0
        %v294 = vsel %vm250, %v245, 0
        %v296 = vsel %vm250, %v280, 0
        %298 = vmatprep.subr.mxu0 %v296
        %299 = vmatpush1.msra.mxu0 %v294
        %300 = vmatprep.subr.mxu0 0.0
        %301 = vmatpush1.msra.mxu0 0.0
        %302 = vmatprep.subr.mxu0 0.0
        %303 = vmatpush1.msra.mxu0 0.0
        %304 = vmatprep.subr.mxu0 0.0
        %305 = vmatpush1.msra.mxu0 0.0
        %306 = vmatprep.subr.mxu0 0.0
        %307 = vmatpush1.msra.mxu0 0.0
        %308 = vmatprep.subr.mxu0 0.0
        %309 = vmatpush1.msra.mxu0 0.0
        %310 = vmatprep.subr.mxu0 0.0
        %311 = vmatpush1.msra.mxu0 0.0
        %312 = vmatprep.subr.mxu0 0.0
        %313 = vmatpush1.msra.mxu0 0.0
        %314 = vmatprep.subr.mxu0 0.0
        %315 = vmatpush1.msra.mxu0 0.0
        %316 = vmatprep.subr.mxu0 0.0
        %317 = vmatpush1.msra.mxu0 0.0
        %318 = vmatprep.subr.mxu0 0.0
        %319 = vmatpush1.msra.mxu0 0.0
        %320 = vmatprep.subr.mxu0 0.0
        %321 = vmatpush1.msra.mxu0 0.0
        %322 = vmatprep.subr.mxu0 0.0
        %323 = vmatpush1.msra.mxu0 0.0
        %324 = vmatprep.subr.mxu0 0.0
        %325 = vmatpush1.msra.mxu0 0.0
        %326 = vmatprep.subr.mxu0 0.0
        %327 = vmatpush1.msra.mxu0 0.0
        %328 = vmatprep.subr.mxu0 0.0
        %329 = vmatpush1.msra.mxu0 0.0
        %330 = vmatprep.subr.mxu0 0.0
        %331 = vmatpush1.msra.mxu0 0.0
        %332 = vmatprep.subr.mxu0 0.0
        %333 = vmatpush1.msra.mxu0 0.0
        %334 = vmatprep.subr.mxu0 0.0
        %335 = vmatpush1.msra.mxu0 0.0
        %336 = vmatprep.subr.mxu0 0.0
        %337 = vmatpush1.msra.mxu0 0.0
        %338 = vmatprep.subr.mxu0 0.0
        %339 = vmatpush1.msra.mxu0 0.0
        %340 = vmatprep.subr.mxu0 0.0
        %341 = vmatpush1.msra.mxu0 0.0
        %342 = vmatprep.subr.mxu0 0.0
        %343 = vmatpush1.msra.mxu0 0.0
        %344 = vmatprep.subr.mxu0 0.0
        %345 = vmatpush1.msra.mxu0 0.0
        %346 = vmatprep.subr.mxu0 0.0
        %347 = vmatpush1.msra.mxu0 0.0
        %348 = vmatprep.subr.mxu0 0.0
        %349 = vmatpush1.msra.mxu0 0.0
        %350 = vmatprep.subr.mxu0 0.0
        %351 = vmatpush1.msra.mxu0 0.0
        %352 = vmatprep.subr.mxu0 0.0
        %353 = vmatpush1.msra.mxu0 0.0
        %354 = vmatprep.subr.mxu0 0.0
        %355 = vmatpush1.msra.mxu0 0.0
        %356 = vmatprep.subr.mxu0 0.0
        %357 = vmatpush1.msra.mxu0 0.0
        %358 = vmatprep.subr.mxu0 0.0
        %359 = vmatpush1.msra.mxu0 0.0
        %360 = vmatprep.subr.mxu0 0.0
        %361 = vmatpush1.msra.mxu0 0.0
        %362 = vmatprep.mubr.f32.mxu0 0.0
        %363 = vmatmul.mubr.f32.gmra.mrb[0].mxu0 %v283
        %v364 = vpop.f32.mrb[0].mxu0
        %v365 = vadd.f32 0.0, %v364
        %v366 = vpop.f32.mrb[0].mxu0
        %v367 = vadd.f32 0.0, %v366
        %368 = vmatprep.mubr.f32.mxu0 0.0
        %369 = vmatmul.mubr.f32.gmra.mrb[0].mxu0 %v286
        %v370 = vpop.f32.mrb[0].mxu0
        %v371 = vadd.f32 0.0, %v370
        %v372 = vpop.f32.mrb[0].mxu0
        %v373 = vadd.f32 0.0, %v372
        %374 = vmatprep.mubr.f32.mxu0 0.0
        %375 = vmatmul.mubr.f32.gmra.mrb[0].mxu0 %v289
        %v376 = vpop.f32.mrb[0].mxu0
        %v377 = vadd.f32 0.0, %v376
        %v378 = vpop.f32.mrb[0].mxu0
        %v379 = vadd.f32 0.0, %v378
        %380 = vmatprep.mubr.f32.mxu0 0.0
        %381 = vmatmul.mubr.f32.gmra.mrb[0].mxu0 %v292
        %v382 = vpop.f32.mrb[0].mxu0
        %v383 = vadd.f32 0.0, %v382
        %v384 = vpop.f32.mrb[0].mxu0
        %v385 = vadd.f32 0.0, %v384
        %386 = vdwg.mxu0
        %v388 = vsel %vm281, %v244, 0
        %390 = vmatprep.subr.mxu0 %v296
        %391 = vmatpush1.msra.mxu0 %v294
        %392 = vmatprep.subr.mxu0 0.0
        %393 = vmatpush1.msra.mxu0 0.0
        %394 = vmatprep.subr.mxu0 0.0
        %395 = vmatpush1.msra.mxu0 0.0
        %396 = vmatprep.subr.mxu0 0.0
        %397 = vmatpush1.msra.mxu0 0.0
        %398 = vmatprep.subr.mxu0 0.0
        %399 = vmatpush1.msra.mxu0 0.0
        %400 = vmatprep.subr.mxu0 0.0
        %401 = vmatpush1.msra.mxu0 0.0
        %402 = vmatprep.subr.mxu0 0.0
        %403 = vmatpush1.msra.mxu0 0.0
        %404 = vmatprep.subr.mxu0 0.0
        %405 = vmatpush1.msra.mxu0 0.0
        %406 = vmatprep.subr.mxu0 0.0
        %407 = vmatpush1.msra.mxu0 0.0
        %408 = vmatprep.subr.mxu0 0.0
        %409 = vmatpush1.msra.mxu0 0.0
        %410 = vmatprep.subr.mxu0 0.0
        %411 = vmatpush1.msra.mxu0 0.0
        %412 = vmatprep.subr.mxu0 0.0
        %413 = vmatpush1.msra.mxu0 0.0
        %414 = vmatprep.subr.mxu0 0.0
        %415 = vmatpush1.msra.mxu0 0.0
        %416 = vmatprep.subr.mxu0 0.0
        %417 = vmatpush1.msra.mxu0 0.0
        %418 = vmatprep.subr.mxu0 0.0
        %419 = vmatpush1.msra.mxu0 0.0
        %420 = vmatprep.subr.mxu0 0.0
        %421 = vmatpush1.msra.mxu0 0.0
        %422 = vmatprep.subr.mxu0 0.0
        %423 = vmatpush1.msra.mxu0 0.0
        %424 = vmatprep.subr.mxu0 0.0
        %425 = vmatpush1.msra.mxu0 0.0
        %426 = vmatprep.subr.mxu0 0.0
        %427 = vmatpush1.msra.mxu0 0.0
        %428 = vmatprep.subr.mxu0 0.0
        %429 = vmatpush1.msra.mxu0 0.0
        %430 = vmatprep.subr.mxu0 0.0
        %431 = vmatpush1.msra.mxu0 0.0
        %432 = vmatprep.subr.mxu0 0.0
        %433 = vmatpush1.msra.mxu0 0.0
        %434 = vmatprep.subr.mxu0 0.0
        %435 = vmatpush1.msra.mxu0 0.0
        %436 = vmatprep.subr.mxu0 0.0
        %437 = vmatpush1.msra.mxu0 0.0
        %438 = vmatprep.subr.mxu0 0.0
        %439 = vmatpush1.msra.mxu0 0.0
        %440 = vmatprep.subr.mxu0 0.0
        %441 = vmatpush1.msra.mxu0 0.0
        %442 = vmatprep.subr.mxu0 0.0
        %443 = vmatpush1.msra.mxu0 0.0
        %444 = vmatprep.subr.mxu0 0.0
        %445 = vmatpush1.msra.mxu0 0.0
        %446 = vmatprep.subr.mxu0 0.0
        %447 = vmatpush1.msra.mxu0 0.0
        %448 = vmatprep.subr.mxu0 0.0
        %449 = vmatpush1.msra.mxu0 0.0
        %450 = vmatprep.subr.mxu0 0.0
        %451 = vmatpush1.msra.mxu0 0.0
        %452 = vmatprep.subr.mxu0 0.0
        %453 = vmatpush1.msra.mxu0 0.0
        %454 = vmatprep.mubr.f32.mxu0 0.0
        %455 = vmatmul.mubr.f32.gmra.mrb[0].mxu0 %v388
        %v456 = vpop.f32.mrb[0].mxu0
        %v457 = vadd.f32 0.0, %v456
        %v458 = vpop.f32.mrb[0].mxu0
        %v459 = vadd.f32 0.0, %v458
        %460 = vdwg.mxu0
        %v461 = vmul.f32 %v457, %v277
        %v462 = vmul.f32 %v459, %v278
        %v465 = vcombine.low %v461, %v462
        %467 = vst [vmem:[%s221] sm:$0xff] %v465
        %v468 = vand.u32 2147483647, %v365
        %v469 = vand.u32 2147483647, %v367
        %v470 = vand.u32 2147483647, %v371
        %v471 = vand.u32 2147483647, %v373
        %v472 = vand.u32 2147483647, %v377
        %v473 = vand.u32 2147483647, %v379
        %v474 = vand.u32 2147483647, %v383
        %v475 = vand.u32 2147483647, %v385
        %v476 = vadd.f32 %v468, %v470
        %v477 = vadd.f32 %v476, %v472
        %v478 = vadd.f32 %v477, %v474
        %v479 = vrot.slane %v478, 4
        %v480 = vadd.f32 %v478, %v479
        %v481 = vrot.slane %v480, 2
        %v482 = vadd.f32 %v480, %v481
        %v483 = vrot.slane %v482, 1
        %v484 = vadd.f32 %v482, %v483
        %v485 = vadd.f32 %v469, %v471
        %v486 = vadd.f32 %v485, %v473
        %v487 = vadd.f32 %v486, %v475
        %v488 = vrot.slane %v487, 4
        %v489 = vadd.f32 %v487, %v488
        %v490 = vrot.slane %v489, 2
        %v491 = vadd.f32 %v489, %v490
        %v492 = vrot.slane %v491, 1
        %v493 = vadd.f32 %v491, %v492
        %v494 = vmul.f32 %v484, %v277
        %v495 = vmul.f32 %v493, %v278
        %v496 = vadd.f32 %v494, 0.0
        %v497 = vadd.f32 %v495, 0.0
        %v500 = vcombine.low %v496, %v497
        %v502 = vunpack.c.l.s4 1966171168
        %v503 = vunpack.c.0.s8 %v502
        %v504 = vlaneseq
        %v505 = vshrl.u32 %v504, 7
        %v506 = vsub.s32 %v503, %v505
        %v507 = vrot.slane %v500, %v506
        %v509 = vunpack.c.l.s4 1966171168
        %v510 = vunpack.c.0.s8 %v509
        %v511 = vlaneseq
        %v512 = vshrl.u32 %v511, 7
        %v513 = vsub.s32 %v510, %v512
        %v514 = vrot.slane %v507, %v513
        %v516 = vlaneseq
        %vm517 = vcmp.ge.s32.totalorder %v516, 0
        %vm518 = vcmp.lt.s32.totalorder %v516, 256
        %vm519 = vmand %vm517, %vm518
        %520 = vst.msk [vmem:[%s228] sm:$0x3] %vm519, %v514
        %s521 = sand.u32 %s114, 1
        %s522 = scalar_lea.sflag [#allocation3], %s521
        %s523 = sand.u32 %s114, 1
        %s524 = smul.addr %s523, 8
        %s525 = scalar_lea.vmem [#allocation2], %s524
        %s526 = sand.u32 %s142, 1
        %s527 = scalar_lea.sflag [#allocation5], %s526
        %s528 = sand.u32 %s142, 1
        %s529 = smul.addr %s528, 2
        %s530 = scalar_lea.vmem [#allocation4], %s529
        // Predicated region
        $region33: #{tpu_custom_call.1} parent=31 // pred_check
          %p531 = pneg %p124
        $region34: #{tpu_custom_call.1} parent=31 // pred_check_branch
          %533 = sbr.rel (%p531) target = $region36
        $region35: #{tpu_custom_call.1} parent=31 // pred_region
          %s534 = smul.u32 2, %s27
          %s536 = ssub.s32 128, 128
          %537 = vsyncadd %s522, %s536
          %s538 = smul.addr %s26, 2
          %s539 = sadd.s32 %s534, %s538
          %s540 = smul.addr %s539, 64
          %s541 = scalar_lea.hbm %s3, %s540
          %s543 = sshll.u32 %s525, 4
          %s544 = int_to_ptr.vmem [resolvable:$true] %s543
          %546 = dma.vmem_to_hbm [thread:$0]  %s544, 128, %s541, %s522
        $region36: #{tpu_custom_call.1} parent=31 // pred_fallthru
          _
        // Predicated region
        $region37: #{tpu_custom_call.1} parent=31 // pred_check
          %p547 = pneg %p152
        $region38: #{tpu_custom_call.1} parent=31 // pred_check_branch
          %549 = sbr.rel (%p547) target = $region40
        $region39: #{tpu_custom_call.1} parent=31 // pred_region
          %s551 = ssub.s32 32, 32
          %552 = vsyncadd %s527, %s551
          %s553 = smul.addr %s27, 2
          %s554 = smul.addr %s26, 2
          %s555 = sadd.s32 %s553, %s554
          %s556 = smul.addr %s555, 16
          %s557 = scalar_lea.hbm %s4, %s556
          %s559 = sshll.u32 %s530, 4
          %s560 = int_to_ptr.vmem [resolvable:$true] %s559
          %562 = dma.vmem_to_hbm [thread:$0]  %s560, 32, %s557, %s527
        $region40: #{tpu_custom_call.1} parent=31 // pred_fallthru
          _
      $region32: #{tpu_custom_call.1} parent=5 // pred_fallthru
        _
      %p563 = scmp.le.s32.totalorder 2, %s17
      // Predicated region
      $region41: #{tpu_custom_call.1} parent=5 // pred_check
        %p564 = pneg %p563
      $region42: #{tpu_custom_call.1} parent=5 // pred_check_branch
        %566 = sbr.rel (%p564) target = $region44
      $region43: #{tpu_custom_call.1} parent=5 // pred_region
        %s567 = ssub.s32 %s17, 2
        // Predicated region
        $region45: #{tpu_custom_call.1} parent=43 // pred_check
          %p568 = pneg %p130
        $region46: #{tpu_custom_call.1} parent=43 // pred_check_branch
          %570 = sbr.rel (%p568) target = $region48
        $region47: #{tpu_custom_call.1} parent=43 // pred_region
          %s571 = sand.u32 %s115, 1
          %s572 = scalar_lea.sflag [#allocation3], %s571
          %s573 = sand.u32 %s115, 1
          %s574 = smul.addr %s573, 8
          %s575 = scalar_lea.vmem [#allocation2], %s574
          %576 = dma.done %s572, 128
        $region48: #{tpu_custom_call.1} parent=43 // pred_fallthru
          _
        // Predicated region
        $region49: #{tpu_custom_call.1} parent=43 // pred_check
          %p577 = pneg %p158
        $region50: #{tpu_custom_call.1} parent=43 // pred_check_branch
          %579 = sbr.rel (%p577) target = $region52
        $region51: #{tpu_custom_call.1} parent=43 // pred_region
          %s580 = sand.u32 %s143, 1
          %s581 = scalar_lea.sflag [#allocation5], %s580
          %s582 = sand.u32 %s143, 1
          %s583 = smul.addr %s582, 2
          %s584 = scalar_lea.vmem [#allocation4], %s583
          %585 = dma.done %s581, 32
        $region52: #{tpu_custom_call.1} parent=43 // pred_fallthru
          _
      $region44: #{tpu_custom_call.1} parent=5 // pred_fallthru
        _
    $region6: #{tpu_custom_call.1} parent=1 // loop_footer
      %s21 = sadd.s32 1, %s17
    $region7: #{tpu_custom_call.1} parent=1 // loop_footer_branch
      %16 = sbr.rel target = $region3
    $region8: #{tpu_custom_call.1} parent=1 // loop_exit
      _
    %586 = vsyncpa [#allocation3], 1
    %s587 = scalar_lea.sflag [#allocation3], 1
    %588 = vsyncpa %s587, 1
    %589 = vsyncpa [#allocation5], 1
    %s590 = scalar_lea.sflag [#allocation5], 1
    %591 = vsyncpa %s590, 1

</llo_original>
